<compile_context>
chip_gen: v7x
topology: tpu7x:2x2x1
jax: 0.10.0
libtpu: 0.0.40
codegen_flags: <defaults>
</compile_context>

<pallas_src>
import functools

import jax
import jax.numpy as jnp
import numpy as np
from jax.experimental import pallas as pl
from jax.experimental.pallas import tpu as pltpu


def _round_up(x, m):
    return (x + m - 1) // m * m


# --------------------------------------------------------------------------
# Kernel 1: fused accumulate + normalize, whole (packed) batch VMEM-resident.
# --------------------------------------------------------------------------
def _fused_resident_kernel(x_ref, sum_ref, sumsq_ref, gate_ref, inv_count_ref,
                           eps_ref, out_ref, new_sum_ref, new_sumsq_ref,
                           *, feat, pack):
    x = x_ref[...]

    @pl.when(gate_ref[0] != 0)
    def _accumulate():
        s = jnp.sum(x, axis=0, keepdims=True)
        sq = jnp.sum(x * x, axis=0, keepdims=True)
        fs, fsq = s, sq
        # Fold the `pack` lane segments (roll runs on the XLU slot).  The
        # rotate-and-add leaves the per-feature batch sums replicated across
        # every segment, which is exactly the packed broadcast layout the
        # normalization below consumes.
        for k in range(1, pack):
            fs = fs + pltpu.roll(s, k * feat, 1)
            fsq = fsq + pltpu.roll(sq, k * feat, 1)
        new_sum_ref[...] = sum_ref[...] + fs
        new_sumsq_ref[...] = sumsq_ref[...] + fsq

    @pl.when(gate_ref[0] == 0)
    def _passthrough():
        new_sum_ref[...] = sum_ref[...]
        new_sumsq_ref[...] = sumsq_ref[...]

    inv_c = inv_count_ref[0]                     # 1 / max(new_count, 1)
    mean = new_sum_ref[...] * inv_c
    # Clamp var >= 0: f32 cancellation can make sumsq/c - mean^2 slightly
    # negative, which would turn sqrt into NaN.
    var = jnp.maximum(new_sumsq_ref[...] * inv_c - mean * mean, 0.0)
    std = jnp.maximum(jnp.sqrt(var), eps_ref[0])
    inv_std = 1.0 / std                          # exact; only (1, lanes) elems
    out_ref[...] = ((x - mean) * inv_std).astype(out_ref.dtype)


# --------------------------------------------------------------------------
# Kernel 2: streamed batch-statistics reduction (only called via lax.cond
# when the accumulation gate is on).
# --------------------------------------------------------------------------
def _reduce_kernel(x_ref, old_sum_ref, old_sumsq_ref,
                   new_sum_ref, new_sumsq_ref,
                   sum_acc, sumsq_acc, *, feat, pack):
    j = pl.program_id(0)

    @pl.when(j == 0)
    def _init():
        sum_acc[...] = jnp.zeros_like(sum_acc)
        sumsq_acc[...] = jnp.zeros_like(sumsq_acc)

    x = x_ref[...]
    sum_acc[...] += jnp.sum(x, axis=0, keepdims=True)
    sumsq_acc[...] += jnp.sum(x * x, axis=0, keepdims=True)

    @pl.when(j == pl.num_programs(0) - 1)
    def _finalize():
        s = sum_acc[...]
        sq = sumsq_acc[...]
        fs, fsq = s, sq
        for k in range(1, pack):
            fs = fs + pltpu.roll(s, k * feat, 1)
            fsq = fsq + pltpu.roll(sq, k * feat, 1)
        new_sum_ref[...] = old_sum_ref[...] + fs
        new_sumsq_ref[...] = old_sumsq_ref[...] + fsq


# --------------------------------------------------------------------------
# Kernel 3: streamed elementwise normalization (mean / inv_std precomputed in
# the wrapper from the (1, lanes) stats, so the inner loop is one subtract,
# one multiply, one store per vreg).
# --------------------------------------------------------------------------
def _normalize_kernel(x_ref, mean_ref, inv_std_ref, out_ref):
    out_ref[...] = ((x_ref[...] - mean_ref[...]) * inv_std_ref[...]).astype(
        out_ref.dtype)


# --------------------------------------------------------------------------
# Wrapper
# --------------------------------------------------------------------------
@functools.partial(
    jax.jit,
    static_argnames=("accumulate", "max_accumulations", "resident_rows",
                     "row_tile_target"))
def normalizer_forward(
    batched_data,        # (N, D) float32
    acc_sum,             # (D,)   float32
    acc_sum_squared,     # (D,)   float32
    acc_count,           # (1,)   float32
    num_accumulations,   # (1,)   float32
    std_epsilon,         # (1,)   float32
    accumulate: bool,
    max_accumulations: int = 10**6,
    resident_rows: int = 2048,     # packed-row cap for the fused VMEM path
    row_tile_target: int = 1024,   # streamed row-tile target
):
    """Returns (normalized, new_acc_sum, new_acc_sum_squared,
                new_acc_count, new_num_accumulations)."""
    n, d = batched_data.shape

    # Lane-dense packing: (N, D) -> (N/pack, pack*D) so the last dim fills all
    # 128 lanes (avoids masked partial stores when D < 128).
    pack = 128 // d if (d <= 128 and 128 % d == 0) else 1
    lanes = pack * d
    packed_rows = -(-n // pack)

    x = batched_data.astype(jnp.float32)
    acc_sum = acc_sum.astype(jnp.float32)
    acc_sum_squared = acc_sum_squared.astype(jnp.float32)
    count = acc_count.astype(jnp.float32)
    num = num_accumulations.astype(jnp.float32)
    eps = std_epsilon.astype(jnp.float32)

    use_resident = bool(accumulate) and packed_rows <= resident_rows

    if use_resident or packed_rows <= row_tile_target:
        tiles = 1
        row_tile = packed_rows            # single full-array block
        rows_padded = packed_rows
    else:
        # Adaptive tile: pad by < 8*tiles rows instead of a full tile.
        tiles = -(-packed_rows // row_tile_target)
        row_tile = _round_up(-(-packed_rows // tiles), 8)
        rows_padded = row_tile * tiles

    n_pad = rows_padded * pack
    if n_pad != n:
        # Only hit for awkward batch sizes; zero rows contribute nothing to
        # the sums and their normalized values are sliced off below.
        # TODO(synk): handle the <= (8*tiles*pack) remainder rows in-kernel to
        #             avoid this extra HBM pass for awkward sizes.
        x = jnp.pad(x, ((0, n_pad - n), (0, 0)))
    x_packed = x.reshape(rows_padded, lanes)          # free contiguous reshape

    sum_packed = jnp.tile(acc_sum.reshape(1, d), (1, pack))
    sumsq_packed = jnp.tile(acc_sum_squared.reshape(1, d), (1, pack))

    # Scalar bookkeeping (cheap) done at the JAX level.
    if accumulate:
        gate_bool = num[0] < jnp.float32(max_accumulations)
        gate_f = gate_bool.astype(jnp.float32)
        new_count = count + gate_f * jnp.float32(n)
        new_num = num + gate_f
    else:
        new_count = count
        new_num = num

    x_spec = pl.BlockSpec((row_tile, lanes), lambda i: (i, 0))
    vec_spec = pl.BlockSpec((1, lanes), lambda i: (0, 0))
    smem_spec = pl.BlockSpec(memory_space=pltpu.MemorySpace.SMEM)

    if use_resident:
        gate_i = gate_bool.astype(jnp.int32).reshape(1)
        inv_count = 1.0 / jnp.maximum(new_count, 1.0)          # (1,)
        fused = functools.partial(_fused_resident_kernel, feat=d, pack=pack)
        out_packed, new_sum_p, new_sumsq_p = pl.pallas_call(
            fused,
            grid=(1,),
            in_specs=[x_spec, vec_spec, vec_spec,
                      smem_spec, smem_spec, smem_spec],
            out_specs=(x_spec, vec_spec, vec_spec),
            out_shape=(
                jax.ShapeDtypeStruct((rows_padded, lanes), jnp.float32),
                jax.ShapeDtypeStruct((1, lanes), jnp.float32),
                jax.ShapeDtypeStruct((1, lanes), jnp.float32),
            ),
            compiler_params=pltpu.CompilerParams(
                dimension_semantics=("arbitrary",)),
        )(x_packed, sum_packed, sumsq_packed, gate_i, inv_count, eps)
    else:
        if accumulate:
            reduce_fn = functools.partial(_reduce_kernel, feat=d, pack=pack)

            def _run_reduce(ops):
                xp, sp, sqp = ops
                s_new, sq_new = pl.pallas_call(
                    reduce_fn,
                    grid=(tiles,),
                    in_specs=[x_spec, vec_spec, vec_spec],
                    out_specs=(vec_spec, vec_spec),
                    out_shape=(
                        jax.ShapeDtypeStruct((1, lanes), jnp.float32),
                        jax.ShapeDtypeStruct((1, lanes), jnp.float32),
                    ),
                    scratch_shapes=[
                        pltpu.VMEM((1, lanes), jnp.float32),
                        pltpu.VMEM((1, lanes), jnp.float32),
                    ],
                    compiler_params=pltpu.CompilerParams(
                        dimension_semantics=("arbitrary",)),
                )(xp, sp, sqp)
                return s_new, sq_new

            def _skip(ops):
                return ops[1], ops[2]

            # Skip the reduction pass (including its HBM traffic) entirely
            # once the accumulation gate is saturated.
            new_sum_p, new_sumsq_p = jax.lax.cond(
                gate_bool, _run_reduce, _skip,
                (x_packed, sum_packed, sumsq_packed))
        else:
            new_sum_p, new_sumsq_p = sum_packed, sumsq_packed

        # Tiny (1, lanes) stat math at the XLA level.
        inv_c = 1.0 / jnp.maximum(new_count[0], 1.0)
        mean = new_sum_p * inv_c
        var = jnp.maximum(new_sumsq_p * inv_c - mean * mean, 0.0)
        std = jnp.maximum(jnp.sqrt(var), eps[0])
        inv_std = 1.0 / std

        out_packed = pl.pallas_call(
            _normalize_kernel,
            grid=(tiles,),
            in_specs=[x_spec, vec_spec, vec_spec],
            out_specs=x_spec,
            out_shape=jax.ShapeDtypeStruct((rows_padded, lanes), jnp.float32),
            compiler_params=pltpu.CompilerParams(
                dimension_semantics=("parallel",)),
        )(x_packed, mean, inv_std)

    out = out_packed.reshape(n_pad, d)
    if n_pad != n:
        out = out[:n]
    new_sum = new_sum_p[0, :d]
    new_sumsq = new_sumsq_p[0, :d]
    return out, new_sum, new_sumsq, new_count, new_num


# --------------------------------------------------------------------------
# Pure-numpy reference of the PyTorch module semantics
# --------------------------------------------------------------------------
def _reference_forward(x, acc_sum, acc_sumsq, acc_count, num_acc, eps,
                       accumulate, max_accumulations):
    x = np.asarray(x, np.float32)
    acc_sum = np.asarray(acc_sum, np.float32).copy()
    acc_sumsq = np.asarray(acc_sumsq, np.float32).copy()
    acc_count = np.asarray(acc_count, np.float32).copy()
    num_acc = np.asarray(num_acc, np.float32).copy()
    if accumulate and num_acc[0] < max_accumulations:
        acc_sum += x.sum(0)
        acc_sumsq += (x ** 2).sum(0)
        acc_count += np.float32(x.shape[0])
        num_acc += 1.0
    safe = np.maximum(acc_count, 1.0)
    mean = acc_sum / safe
    std = np.maximum(np.sqrt(acc_sumsq / safe - mean ** 2),
                     np.asarray(eps, np.float32))
    return (x - mean) / std, acc_sum, acc_sumsq, acc_count, num_acc


if __name__ == "__main__":
    size = 32
    key = jax.random.PRNGKey(0)
    k1, k2, k3 = jax.random.split(key, 3)

    eps = jnp.full((1,), 1e-8, jnp.float32)

    def check(actual, desired, rtol, atol):
        np.testing.assert_allclose(np.asarray(actual), desired,
                                   rtol=rtol, atol=atol)

    acc_sum = jnp.zeros((size,), jnp.float32)
    acc_sumsq = jnp.zeros((size,), jnp.float32)
    acc_count = jnp.zeros((1,), jnp.float32)
    num_acc = jnp.zeros((1,), jnp.float32)

    # ---- Case 1: small batch, accumulate=True -> fused VMEM-resident path --
    x1 = jax.random.normal(k1, (8, size), jnp.float32) * 2.0 + 0.5
    out1, s1, sq1, c1, n1 = normalizer_forward(
        x1, acc_sum, acc_sumsq, acc_count, num_acc, eps, accumulate=True)
    jax.block_until_ready(out1)
    r1 = _reference_forward(x1, acc_sum, acc_sumsq, acc_count, num_acc, eps,
                            True, 10**6)
    check(out1, r1[0], 1e-4, 1e-4)
    check(s1, r1[1], 1e-4, 1e-4)
    check(sq1, r1[2], 1e-4, 1e-4)
    check(c1, r1[3], 1e-6, 1e-6)
    check(n1, r1[4], 1e-6, 1e-6)

    # ---- Case 2: accumulate=False (pure normalize with stored stats) -------
    out2, *_ = normalizer_forward(x1, s1, sq1, c1, n1, eps, accumulate=False)
    jax.block_until_ready(out2)
    r2 = _reference_forward(x1, r1[1], r1[2], r1[3], r1[4], eps, False, 10**6)
    check(out2, r2[0], 1e-4, 1e-4)

    # ---- Case 3: larger batch forced onto the streamed multi-tile path -----
    # (lax.cond-gated reduction + tiled normalize, adaptive row tile, small
    #  wrapper pad: 514 packed rows -> 5 tiles of 104 rows)
    x3 = jax.random.normal(k2, (2056, size), jnp.float32) * 1.5 - 0.25
    out3, s3, sq3, c3, n3 = normalizer_forward(
        x3, s1, sq1, c1, n1, eps, accumulate=True,
        resident_rows=256, row_tile_target=128)
    jax.block_until_ready(out3)
    r3 = _reference_forward(x3, r1[1], r1[2], r1[3], r1[4], eps, True, 10**6)
    check(out3, r3[0], 1e-4, 1e-4)
    check(s3, r3[1], 1e-4, 1e-4)
    check(sq3, r3[2], 2e-4, 2e-4)
    check(c3, r3[3], 1e-6, 1e-6)
    check(n3, r3[4], 1e-6, 1e-6)

    # ---- Case 4: batch not a multiple of the packing factor (pads 2 rows) --
    x4 = jax.random.normal(k3, (10, size), jnp.float32) + 1.0
    out4, s4, sq4, c4, n4 = normalizer_forward(
        x4, s3, sq3, c3, n3, eps, accumulate=True)
    jax.block_until_ready(out4)
    r4 = _reference_forward(x4, r3[1], r3[2], r3[3], r3[4], eps, True, 10**6)
    check(out4, r4[0], 1e-4, 1e-4)
    check(s4, r4[1], 1e-4, 1e-4)
    check(sq4, r4[2], 2e-4, 2e-4)

    # ---- Case 5: saturated accumulation gate (num >= max) ------------------
    out5, s5, sq5, c5, n5 = normalizer_forward(
        x1, s4, sq4, c4, n4, eps, accumulate=True, max_accumulations=2)
    jax.block_until_ready(out5)
    r5 = _reference_forward(x1, r4[1], r4[2], r4[3], r4[4], eps, True, 2)
    check(out5, r5[0], 1e-4, 1e-4)
    check(s5, r5[1], 1e-4, 1e-4)
    check(n5, r5[4], 1e-6, 1e-6)

    # ---- Case 5b: saturated gate on the streamed path (lax.cond skip) ------
    out5b, s5b, *_ = normalizer_forward(
        x1, s4, sq4, c4, n4, eps, accumulate=True, max_accumulations=2,
        resident_rows=0)
    jax.block_until_ready(out5b)
    check(out5b, r5[0], 1e-4, 1e-4)
    check(s5b, r5[1], 1e-4, 1e-4)

    print("KERNEL_OK")
</pallas_src>

<mosaic_0001>
module attributes {stable_mosaic.version = 11 : i64} {
  func.func @_fused_resident_kernel(%arg0: i32, %arg1: memref<2x128xf32, #tpu.memory_space<vmem>>, %arg2: memref<1x128xf32, #tpu.memory_space<vmem>>, %arg3: memref<1x128xf32, #tpu.memory_space<vmem>>, %arg4: memref<1xi32, #tpu.memory_space<smem>>, %arg5: memref<1xf32, #tpu.memory_space<smem>>, %arg6: memref<1xf32, #tpu.memory_space<smem>>, %arg7: memref<2x128xf32, #tpu.memory_space<vmem>>, %arg8: memref<1x128xf32, #tpu.memory_space<vmem>>, %arg9: memref<1x128xf32, #tpu.memory_space<vmem>>) attributes {dimension_semantics = [#tpu.dimension_semantics<arbitrary>], iteration_bounds = array<i64: 1>, scalar_prefetch = 0 : i64, scratch_operands = 0 : i64, tpu.core_type = #tpu.core_type<tc>, window_params = [{transform_indices = @transform_0, window_bounds = array<i64: 2, 128>}, {pipeline_mode = #tpu.pipeline_mode<synchronous>, transform_indices = @transform_1, window_bounds = array<i64: 1, 128>}, {pipeline_mode = #tpu.pipeline_mode<synchronous>, transform_indices = @transform_2, window_bounds = array<i64: 1, 128>}, {transform_indices = @transform_3, window_bounds = array<i64: 1>}, {transform_indices = @transform_4, window_bounds = array<i64: 1>}, {transform_indices = @transform_5, window_bounds = array<i64: 1>}, {transform_indices = @transform_6, window_bounds = array<i64: 2, 128>}, {pipeline_mode = #tpu.pipeline_mode<synchronous>, transform_indices = @transform_7, window_bounds = array<i64: 1, 128>}, {pipeline_mode = #tpu.pipeline_mode<synchronous>, transform_indices = @transform_8, window_bounds = array<i64: 1, 128>}]} {
    %c0 = arith.constant 0 : index
    %c0_0 = arith.constant 0 : index
    %0 = vector.load %arg1[%c0, %c0_0] : memref<2x128xf32, #tpu.memory_space<vmem>>, vector<2x128xf32>
    %c0_1 = arith.constant 0 : index
    %1 = memref.load %arg4[%c0_1] : memref<1xi32, #tpu.memory_space<smem>>
    %c0_i32 = arith.constant 0 : i32
    %2 = arith.cmpi ne, %1, %c0_i32 : i32
    %3 = arith.extui %2 : i1 to i32
    %c0_i32_2 = arith.constant 0 : i32
    %4 = arith.cmpi ne, %3, %c0_i32_2 : i32
    scf.if %4 {
      %cst_15 = arith.constant dense<0.000000e+00> : vector<128xf32>
      %31 = vector.multi_reduction <add>, %0, %cst_15 [0] : vector<2x128xf32> to vector<128xf32>
      %32 = vector.shape_cast %31 : vector<128xf32> to vector<1x128xf32>
      %33 = arith.mulf %0, %0 : vector<2x128xf32>
      %cst_16 = arith.constant dense<0.000000e+00> : vector<128xf32>
      %34 = vector.multi_reduction <add>, %33, %cst_16 [0] : vector<2x128xf32> to vector<128xf32>
      %35 = vector.shape_cast %34 : vector<128xf32> to vector<1x128xf32>
      %c32_i32 = arith.constant 32 : i32
      %36 = tpu.dynamic_rotate %32 by %c32_i32 dim 1 : vector<1x128xf32>, i32 -> vector<1x128xf32>
      %37 = arith.addf %32, %36 : vector<1x128xf32>
      %c32_i32_17 = arith.constant 32 : i32
      %38 = tpu.dynamic_rotate %35 by %c32_i32_17 dim 1 : vector<1x128xf32>, i32 -> vector<1x128xf32>
      %39 = arith.addf %35, %38 : vector<1x128xf32>
      %c64_i32 = arith.constant 64 : i32
      %40 = tpu.dynamic_rotate %32 by %c64_i32 dim 1 : vector<1x128xf32>, i32 -> vector<1x128xf32>
      %41 = arith.addf %37, %40 : vector<1x128xf32>
      %c64_i32_18 = arith.constant 64 : i32
      %42 = tpu.dynamic_rotate %35 by %c64_i32_18 dim 1 : vector<1x128xf32>, i32 -> vector<1x128xf32>
      %43 = arith.addf %39, %42 : vector<1x128xf32>
      %c96_i32 = arith.constant 96 : i32
      %44 = tpu.dynamic_rotate %32 by %c96_i32 dim 1 : vector<1x128xf32>, i32 -> vector<1x128xf32>
      %45 = arith.addf %41, %44 : vector<1x128xf32>
      %c96_i32_19 = arith.constant 96 : i32
      %46 = tpu.dynamic_rotate %35 by %c96_i32_19 dim 1 : vector<1x128xf32>, i32 -> vector<1x128xf32>
      %47 = arith.addf %43, %46 : vector<1x128xf32>
      %c0_20 = arith.constant 0 : index
      %c0_21 = arith.constant 0 : index
      %48 = vector.load %arg2[%c0_20, %c0_21] : memref<1x128xf32, #tpu.memory_space<vmem>>, vector<1x128xf32>
      %49 = arith.addf %48, %45 : vector<1x128xf32>
      %c0_22 = arith.constant 0 : index
      %c0_23 = arith.constant 0 : index
      %50 = vector.load %arg8[%c0_22, %c0_23] : memref<1x128xf32, #tpu.memory_space<vmem>>, vector<1x128xf32>
      tpu.vector_store %arg8[%c0_22, %c0_23], %49 {strides = array<i32>} : memref<1x128xf32, #tpu.memory_space<vmem>>, vector<1x128xf32>,
      %c0_24 = arith.constant 0 : index
      %c0_25 = arith.constant 0 : index
      %51 = vector.load %arg3[%c0_24, %c0_25] : memref<1x128xf32, #tpu.memory_space<vmem>>, vector<1x128xf32>
      %52 = arith.addf %51, %47 : vector<1x128xf32>
      %c0_26 = arith.constant 0 : index
      %c0_27 = arith.constant 0 : index
      %53 = vector.load %arg9[%c0_26, %c0_27] : memref<1x128xf32, #tpu.memory_space<vmem>>, vector<1x128xf32>
      tpu.vector_store %arg9[%c0_26, %c0_27], %52 {strides = array<i32>} : memref<1x128xf32, #tpu.memory_space<vmem>>, vector<1x128xf32>,
    } else {
    }
    %c0_3 = arith.constant 0 : index
    %5 = memref.load %arg4[%c0_3] : memref<1xi32, #tpu.memory_space<smem>>
    %c0_i32_4 = arith.constant 0 : i32
    %6 = arith.cmpi eq, %5, %c0_i32_4 : i32
    %7 = arith.extui %6 : i1 to i32
    %c0_i32_5 = arith.constant 0 : i32
    %8 = arith.cmpi ne, %7, %c0_i32_5 : i32
    scf.if %8 {
      %c0_15 = arith.constant 0 : index
      %c0_16 = arith.constant 0 : index
      %31 = vector.load %arg2[%c0_15, %c0_16] : memref<1x128xf32, #tpu.memory_space<vmem>>, vector<1x128xf32>
      %c0_17 = arith.constant 0 : index
      %c0_18 = arith.constant 0 : index
      %32 = vector.load %arg8[%c0_17, %c0_18] : memref<1x128xf32, #tpu.memory_space<vmem>>, vector<1x128xf32>
      tpu.vector_store %arg8[%c0_17, %c0_18], %31 {strides = array<i32>} : memref<1x128xf32, #tpu.memory_space<vmem>>, vector<1x128xf32>,
      %c0_19 = arith.constant 0 : index
      %c0_20 = arith.constant 0 : index
      %33 = vector.load %arg3[%c0_19, %c0_20] : memref<1x128xf32, #tpu.memory_space<vmem>>, vector<1x128xf32>
      %c0_21 = arith.constant 0 : index
      %c0_22 = arith.constant 0 : index
      %34 = vector.load %arg9[%c0_21, %c0_22] : memref<1x128xf32, #tpu.memory_space<vmem>>, vector<1x128xf32>
      tpu.vector_store %arg9[%c0_21, %c0_22], %33 {strides = array<i32>} : memref<1x128xf32, #tpu.memory_space<vmem>>, vector<1x128xf32>,
    } else {
    }
    %c0_6 = arith.constant 0 : index
    %9 = memref.load %arg5[%c0_6] : memref<1xf32, #tpu.memory_space<smem>>
    %c0_7 = arith.constant 0 : index
    %c0_8 = arith.constant 0 : index
    %10 = vector.load %arg8[%c0_7, %c0_8] : memref<1x128xf32, #tpu.memory_space<vmem>>, vector<1x128xf32>
    %11 = vector.broadcast %9 : f32 to vector<1x128xf32>
    %12 = arith.mulf %10, %11 : vector<1x128xf32>
    %c0_9 = arith.constant 0 : index
    %c0_10 = arith.constant 0 : index
    %13 = vector.load %arg9[%c0_9, %c0_10] : memref<1x128xf32, #tpu.memory_space<vmem>>, vector<1x128xf32>
    %14 = vector.broadcast %9 : f32 to vector<1x128xf32>
    %15 = arith.mulf %13, %14 : vector<1x128xf32>
    %16 = arith.mulf %12, %12 : vector<1x128xf32>
    %17 = arith.subf %15, %16 : vector<1x128xf32>
    %cst = arith.constant 0.000000e+00 : f32
    %18 = vector.broadcast %cst : f32 to vector<1x128xf32>
    %19 = arith.maximumf %17, %18 : vector<1x128xf32>
    %20 = math.sqrt %19 : vector<1x128xf32>
    %c0_11 = arith.constant 0 : index
    %21 = memref.load %arg6[%c0_11] : memref<1xf32, #tpu.memory_space<smem>>
    %22 = vector.broadcast %21 : f32 to vector<1x128xf32>
    %23 = arith.maximumf %20, %22 : vector<1x128xf32>
    %cst_12 = arith.constant 1.000000e+00 : f32
    %24 = vector.broadcast %cst_12 : f32 to vector<1x128xf32>
    %25 = arith.divf %24, %23 : vector<1x128xf32>
    %26 = vector.broadcast %12 : vector<1x128xf32> to vector<2x128xf32>
    %27 = arith.subf %0, %26 : vector<2x128xf32>
    %28 = vector.broadcast %25 : vector<1x128xf32> to vector<2x128xf32>
    %29 = arith.mulf %27, %28 : vector<2x128xf32>
    %c0_13 = arith.constant 0 : index
    %c0_14 = arith.constant 0 : index
    %30 = vector.load %arg7[%c0_13, %c0_14] : memref<2x128xf32, #tpu.memory_space<vmem>>, vector<2x128xf32>
    tpu.vector_store %arg7[%c0_13, %c0_14], %29 {strides = array<i32>} : memref<2x128xf32, #tpu.memory_space<vmem>>, vector<2x128xf32>,
    return
  }
  func.func @transform_0(%arg0: i32) -> (i32, i32) {
    %c0_i32 = arith.constant 0 : i32
    %c0_i32_0 = arith.constant 0 : i32
    return %arg0, %c0_i32 : i32, i32
  }
  func.func @transform_1(%arg0: i32) -> (i32, i32) {
    %c0_i32 = arith.constant 0 : i32
    %c0_i32_0 = arith.constant 0 : i32
    %c0_i32_1 = arith.constant 0 : i32
    return %c0_i32, %c0_i32_0 : i32, i32
  }
  func.func @transform_2(%arg0: i32) -> (i32, i32) {
    %c0_i32 = arith.constant 0 : i32
    %c0_i32_0 = arith.constant 0 : i32
    %c0_i32_1 = arith.constant 0 : i32
    return %c0_i32, %c0_i32_0 : i32, i32
  }
  func.func @transform_3(%arg0: i32) -> i32 {
    %c0_i32 = arith.constant 0 : i32
    %c0_i32_0 = arith.constant 0 : i32
    return %c0_i32 : i32
  }
  func.func @transform_4(%arg0: i32) -> i32 {
    %c0_i32 = arith.constant 0 : i32
    %c0_i32_0 = arith.constant 0 : i32
    return %c0_i32 : i32
  }
  func.func @transform_5(%arg0: i32) -> i32 {
    %c0_i32 = arith.constant 0 : i32
    %c0_i32_0 = arith.constant 0 : i32
    return %c0_i32 : i32
  }
  func.func @transform_6(%arg0: i32) -> (i32, i32) {
    %c0_i32 = arith.constant 0 : i32
    %c0_i32_0 = arith.constant 0 : i32
    return %arg0, %c0_i32 : i32, i32
  }
  func.func @transform_7(%arg0: i32) -> (i32, i32) {
    %c0_i32 = arith.constant 0 : i32
    %c0_i32_0 = arith.constant 0 : i32
    %c0_i32_1 = arith.constant 0 : i32
    return %c0_i32, %c0_i32_0 : i32, i32
  }
  func.func @transform_8(%arg0: i32) -> (i32, i32) {
    %c0_i32 = arith.constant 0 : i32
    %c0_i32_0 = arith.constant 0 : i32
    %c0_i32_1 = arith.constant 0 : i32
    return %c0_i32, %c0_i32_0 : i32, i32
  }
}

</mosaic_0001>

<llo_original>
// kernel: normalizer_forward.1
$region0: #{normalizer_forward.1}
  #allocation0 [shape = 'u32[]', space=smem, size = 0x4, offset = 0x4, fixed_abs, tag = 'smem constant byte address 0x4 - core index']
  #allocation1 [shape = 'u32[144,128]{1,0:T(1,128)}', space=vmem, size = 0x12000, scoped, tag = 'internal scratch']
  #allocation2 [shape = 's32[1]{0:T(128)S(6)}', space=smem, size = 0x200, scoped, tag = 'scoped memory for normalizer_forward.1']
  #allocation3 [shape = 'f32[1]{0:T(128)S(6)}', space=smem, size = 0x200, scoped, tag = 'scoped memory for normalizer_forward.1']
  #allocation4 [shape = 'f32[1]{0:T(128)S(6)}', space=smem, size = 0x200, scoped, tag = 'scoped memory for normalizer_forward.1']
  %s0 = inlined_call_operand.vmem [shape: f32[2,128], index: 0, kind: input, shape index: {}]
  %s1 = inlined_call_operand.vmem [shape: f32[1,128], index: 1, kind: input, shape index: {}]
  %s2 = inlined_call_operand.vmem [shape: f32[1,128], index: 2, kind: input, shape index: {}]
  %s3 = inlined_call_operand.<no memory space> [shape: s32[1], index: 3, kind: input, shape index: {}]
  %s4 = inlined_call_operand.<no memory space> [shape: f32[1], index: 4, kind: input, shape index: {}]
  %s5 = inlined_call_operand.<no memory space> [shape: f32[1], index: 5, kind: input, shape index: {}]
  %s6 = inlined_call_operand.vmem [shape: f32[2,128], index: 6, kind: output, shape index: {0}]
  %s7 = inlined_call_operand.vmem [shape: f32[1,128], index: 7, kind: output, shape index: {1}]
  %s8 = inlined_call_operand.vmem [shape: f32[1,128], index: 8, kind: output, shape index: {2}]
  %9 = xla_tuple %s6, %s7, %s8
  %s10 = sld [smem:[#allocation0]]
  $region58: #{normalizer_forward.1} parent=0
    _
  %s12 = ssub.s32 1, %s10
  %s13 = scalar_select 0, %s12, %s10
  %14 = sst [smem:[#allocation2]] %s3
  %15 = sst [smem:[#allocation3]] %s4
  %16 = sst [smem:[#allocation4]] %s5
  // Predicated region
  $region2: #{normalizer_forward.1} parent=0 // pred_check
    _
  $region3: #{normalizer_forward.1} parent=0 // pred_check_branch
    %18 = sbr.rel (0) target = $region5
  $region4: #{normalizer_forward.1} parent=0 // pred_region
    _
  $region5: #{normalizer_forward.1} parent=0 // pred_fallthru
    _
  // Predicated region
  $region6: #{normalizer_forward.1} parent=0 // pred_check
    _
  $region7: #{normalizer_forward.1} parent=0 // pred_check_branch
    %20 = sbr.rel (0) target = $region9
  $region8: #{normalizer_forward.1} parent=0 // pred_region
    _
  $region9: #{normalizer_forward.1} parent=0 // pred_fallthru
    _
  // Predicated region
  $region10: #{normalizer_forward.1} parent=0 // pred_check
    _
  $region11: #{normalizer_forward.1} parent=0 // pred_check_branch
    %22 = sbr.rel (0) target = $region13
  $region12: #{normalizer_forward.1} parent=0 // pred_region
    _
  $region13: #{normalizer_forward.1} parent=0 // pred_fallthru
    _
  // Predicated region
  $region14: #{normalizer_forward.1} parent=0 // pred_check
    _
  $region15: #{normalizer_forward.1} parent=0 // pred_check_branch
    %24 = sbr.rel (0) target = $region17
  $region16: #{normalizer_forward.1} parent=0 // pred_region
    _
  $region17: #{normalizer_forward.1} parent=0 // pred_fallthru
    _
  // Predicated region
  $region18: #{normalizer_forward.1} parent=0 // pred_check
    _
  $region19: #{normalizer_forward.1} parent=0 // pred_check_branch
    %26 = sbr.rel (0) target = $region21
  $region20: #{normalizer_forward.1} parent=0 // pred_region
    _
  $region21: #{normalizer_forward.1} parent=0 // pred_fallthru
    _
  // Predicated region
  $region22: #{normalizer_forward.1} parent=0 // pred_check
    _
  $region23: #{normalizer_forward.1} parent=0 // pred_check_branch
    %28 = sbr.rel (0) target = $region25
  $region24: #{normalizer_forward.1} parent=0 // pred_region
    _
  $region25: #{normalizer_forward.1} parent=0 // pred_fallthru
    _
  %v29 = vld [vmem:[%s0] sm:$0x3]
  %s30 = sld [smem:[#allocation2]]
  %p31 = scmp.ne.s32.totalorder %s30, 0
  // Predicated region
  $region26: #{normalizer_forward.1} parent=0 // pred_check
    %p32 = pneg %p31
  $region27: #{normalizer_forward.1} parent=0 // pred_check_branch
    %34 = sbr.rel (%p32) target = $region29
  $region28: #{normalizer_forward.1} parent=0 // pred_region
    %vm35 = vcmask 1041408
    %v36 = vsel %vm35, %v29, 0.0
    %v37 = vrot.slane %v36, 4
    %v38 = vadd.f32 %v36, %v37
    %v39 = vrot.slane %v38, 2
    %v40 = vadd.f32 %v38, %v39
    %v41 = vrot.slane %v40, 1
    %v42 = vadd.f32 %v40, %v41
    %v43 = vmul.f32 %v29, %v29
    %v44 = vsel %vm35, %v43, 0.0
    %v45 = vrot.slane %v44, 4
    %v46 = vadd.f32 %v44, %v45
    %v47 = vrot.slane %v46, 2
    %v48 = vadd.f32 %v46, %v47
    %v49 = vrot.slane %v48, 1
    %v50 = vadd.f32 %v48, %v49
    %51 = vrot.lane.b32.xlu0 %v42, 32
    %v52 = vpop.permute.xlu0 %51
    %v53 = vadd.f32 %v42, %v52
    %54 = vrot.lane.b32.xlu0 %v50, 32
    %v55 = vpop.permute.xlu0 %54
    %v56 = vadd.f32 %v50, %v55
    %57 = vrot.lane.b32.xlu0 %v42, 64
    %v58 = vpop.permute.xlu0 %57
    %v59 = vadd.f32 %v53, %v58
    %60 = vrot.lane.b32.xlu0 %v50, 64
    %v61 = vpop.permute.xlu0 %60
    %v62 = vadd.f32 %v56, %v61
    %63 = vrot.lane.b32.xlu0 %v42, 96
    %v64 = vpop.permute.xlu0 %63
    %v65 = vadd.f32 %v59, %v64
    %66 = vrot.lane.b32.xlu0 %v50, 96
    %v67 = vpop.permute.xlu0 %66
    %v68 = vadd.f32 %v62, %v67
    %v69 = vld [vmem:[%s1] sm:$0x1]
    %v70 = vadd.f32 %v69, %v65
    %71 = vst [vmem:[%s7] sm:$0x1] %v70
    %v72 = vld [vmem:[%s2] sm:$0x1]
    %v73 = vadd.f32 %v72, %v68
    %74 = vst [vmem:[%s8] sm:$0x1] %v73
  $region29: #{normalizer_forward.1} parent=0 // pred_fallthru
    _
  %s75 = sld [smem:[#allocation2]]
  %p76 = scmp.eq.s32.totalorder %s75, 0
  // Predicated region
  $region30: #{normalizer_forward.1} parent=0 // pred_check
    %p77 = pneg %p76
  $region31: #{normalizer_forward.1} parent=0 // pred_check_branch
    %79 = sbr.rel (%p77) target = $region33
  $region32: #{normalizer_forward.1} parent=0 // pred_region
    %v80 = vld [vmem:[%s1] sm:$0x1]
    %81 = vst [vmem:[%s7] sm:$0x1] %v80
    %v82 = vld [vmem:[%s2] sm:$0x1]
    %83 = vst [vmem:[%s8] sm:$0x1] %v82
  $region33: #{normalizer_forward.1} parent=0 // pred_fallthru
    _
  %s84 = sld [smem:[#allocation3]]
  %v85 = vld [vmem:[%s7] sm:$0x1]
  %v86 = vstv %s84
  %v87 = vmul.f32 %v85, %v86
  %v88 = vld [vmem:[%s8] sm:$0x1]
  %v89 = vmul.f32 %v88, %v86
  %v90 = vmul.f32 %v87, %v87
  %v91 = vsub.f32 %v89, %v90
  %v92 = vmax.f32 %v91, 0.0
  %v93 = vrsqrt.pop %v92
  %v94 = vmul.f32 %v92, %v93
  %vm95 = vcmp.eq.f32.partialorder %v92, inf
  %v96 = vsel %vm95, %v92, %v94
  %vm97 = vcmp.eq.f32.partialorder %v92, 0.0
  %v98 = vand.u32 %v92, 2147483648
  %v99 = vsel %vm97, %v98, %v96
  %s100 = sld [smem:[#allocation4]]
  %v101 = vstv %s100
  %v102 = vmax.f32 %v99, %v101
  %v103 = vrcp.pop %v102
  %v104 = vmul.f32 1.0, %v103
  %v106 = vlaneseq
  %v107 = vshrl.u32 %v106, 7
  %v108 = vsub.s32 0, %v107
  %v109 = vrot.slane %v87, %v108
  %v111 = vsub.f32 %v29, %v109
  %v113 = vlaneseq
  %v114 = vshrl.u32 %v113, 7
  %v115 = vsub.s32 0, %v114
  %v116 = vrot.slane %v104, %v115
  %v118 = vmul.f32 %v111, %v116
  %119 = vst [vmem:[%s6] sm:$0x3] %v118
  // Predicated region
  $region34: #{normalizer_forward.1} parent=0 // pred_check
    _
  $region35: #{normalizer_forward.1} parent=0 // pred_check_branch
    %121 = sbr.rel (0) target = $region37
  $region36: #{normalizer_forward.1} parent=0 // pred_region
    _
  $region37: #{normalizer_forward.1} parent=0 // pred_fallthru
    _
  // Predicated region
  $region38: #{normalizer_forward.1} parent=0 // pred_check
    _
  $region39: #{normalizer_forward.1} parent=0 // pred_check_branch
    %123 = sbr.rel (0) target = $region41
  $region40: #{normalizer_forward.1} parent=0 // pred_region
    _
  $region41: #{normalizer_forward.1} parent=0 // pred_fallthru
    _
  // Predicated region
  $region42: #{normalizer_forward.1} parent=0 // pred_check
    _
  $region43: #{normalizer_forward.1} parent=0 // pred_check_branch
    %125 = sbr.rel (0) target = $region45
  $region44: #{normalizer_forward.1} parent=0 // pred_region
    _
  $region45: #{normalizer_forward.1} parent=0 // pred_fallthru
    _
  // Predicated region
  $region46: #{normalizer_forward.1} parent=0 // pred_check
    _
  $region47: #{normalizer_forward.1} parent=0 // pred_check_branch
    %127 = sbr.rel (0) target = $region49
  $region48: #{normalizer_forward.1} parent=0 // pred_region
    _
  $region49: #{normalizer_forward.1} parent=0 // pred_fallthru
    _
  // Predicated region
  $region50: #{normalizer_forward.1} parent=0 // pred_check
    _
  $region51: #{normalizer_forward.1} parent=0 // pred_check_branch
    %129 = sbr.rel (0) target = $region53
  $region52: #{normalizer_forward.1} parent=0 // pred_region
    _
  $region53: #{normalizer_forward.1} parent=0 // pred_fallthru
    _
  // Predicated region
  $region54: #{normalizer_forward.1} parent=0 // pred_check
    _
  $region55: #{normalizer_forward.1} parent=0 // pred_check_branch
    %131 = sbr.rel (0) target = $region57
  $region56: #{normalizer_forward.1} parent=0 // pred_region
    _
  $region57: #{normalizer_forward.1} parent=0 // pred_fallthru
    _

</llo_original>
